<compile_context>
chip_gen: v5e
topology: v5e:2x2
jax: 0.10.0
libtpu: 0.0.40
codegen_flags: <defaults>
</compile_context>

<pallas_src>
import functools

import jax
import jax.numpy as jnp
from jax.experimental import pallas as pl
from jax.experimental.pallas import tpu as pltpu


def _focal_loss_kernel(x_ref, t_ref, a_ref, out_ref, *, gamma, n_total, tile_n):
    i = pl.program_id(0)

    x = x_ref[...].astype(jnp.float32)           # (C, T) logits, f32 compute
    t = t_ref[...]                               # (1, T) int32 class ids
    a = a_ref[...]                               # (C, 1) per-class alpha (f32)
    c, tn = x.shape

    # Per-sample softmax pieces; everything per-sample is lane-dense (1, T).
    m = jnp.max(x, axis=0, keepdims=True)        # (1, T)
    e = jnp.exp(x - m)                           # (C, T)
    denom = jnp.sum(e, axis=0, keepdims=True)    # (1, T), >= 1

    # One-hot class mask via iota compare along the sublane (class) axis.
    cls = jax.lax.broadcasted_iota(jnp.int32, (c, tn), 0)
    mask = (cls == t).astype(jnp.float32)        # (C, T)

    e_t = jnp.sum(e * mask, axis=0, keepdims=True)       # (1, T)
    alpha_t = jnp.sum(a * mask, axis=0, keepdims=True)   # (1, T)

    # probs = P[n, targets[n]] + 1e-5 ; exact divide (one (1,T) vector, cheap).
    probs = e_t / denom + 1e-5
    log_p = jnp.log(probs)

    # Static-gamma specialization (jnp.power = 2 extra transcendentals).
    if gamma == 0.0:
        focal = jnp.ones_like(probs)
    elif gamma == 1.0:
        focal = 1.0 - probs
    elif gamma == 2.0:
        om = 1.0 - probs
        focal = om * om
    else:
        # clamp avoids NaN when (p_t + 1e-5) marginally exceeds 1.0
        focal = jnp.power(jnp.maximum(1.0 - probs, 0.0), gamma)

    batch_loss = -alpha_t * focal * log_p        # (1, T)

    # Mask lanes of the (possibly ragged) last tile that lie past the global N.
    col = jax.lax.broadcasted_iota(jnp.int32, (1, tn), 1)
    valid = (i * tile_n + col) < n_total
    batch_loss = jnp.where(valid, batch_loss, 0.0)

    # Lane-dense (1, 128) partial: tile sum in lane 0, zeros elsewhere.
    partial = jnp.sum(batch_loss, axis=1, keepdims=True)          # (1, 1)
    lane = jax.lax.broadcasted_iota(jnp.int32, (1, 128), 1)
    out_ref[...] = jnp.where(lane == 0, partial, 0.0)


def _round_up(x, m):
    return (x + m - 1) // m * m


def _vmem_capacity_bytes():
    # v7x: 64 MiB per TensorCore; v5e/v6e: 128 MiB. Conservative fallback.
    try:
        return int(pltpu.get_tpu_info().vmem_capacity_bytes)
    except Exception:
        return 64 * 1024 * 1024


def _sublane_multiple(itemsize):
    # f32 -> 8 sublanes, bf16 -> 16, int8/fp8 -> 32 (sublane-packed layouts).
    return 8 * max(1, 4 // max(itemsize, 1))


def _padded_bytes_per_lane(c, in_itemsize):
    """Estimated VMEM bytes per lane-column of tile_n, using PADDED shapes."""
    c_in = _round_up(c, _sublane_multiple(in_itemsize))   # padded logits sublanes
    c32 = _round_up(c, 8)                                 # padded f32 temps
    return (
        2 * c_in * in_itemsize      # logits block, double-buffered
        + 2 * 8 * 4                 # (1, T) int32 targets block (8-sublane pad), x2 buffers
        + 6 * c32 * 4               # live f32 (C, T) temporaries (x, e, mask, products)
        + 4 * 32                    # live (1, T) f32 per-sample temporaries (vreg lines)
    )


def _pick_tile_n(n, c, in_itemsize):
    """Largest lane tile keeping padded buffers + temps in budget, while
    guaranteeing >= 2 grid tiles (v7x megacore) whenever N allows."""
    if n <= 128:
        return n                                    # single full block
    per_col = _padded_bytes_per_lane(c, in_itemsize)
    budget = min(_vmem_capacity_bytes() // 4, 24 * 1024 * 1024)
    tile = budget // max(per_col, 1)
    # target <= ~2 MiB of padded logits per buffer; keeps the input DMA streaming
    c_in = _round_up(c, _sublane_multiple(in_itemsize))
    tile = min(tile, (2 * 1024 * 1024) // max(c_in * in_itemsize, 1))
    tile = min(tile, 32768)
    # keep >= 2 grid tiles (4 for larger N) so "parallel" can use both v7x TCs
    min_tiles = 4 if n >= 4 * 128 else 2
    tile = min(tile, _round_up(int(pl.cdiv(n, min_tiles)), 128))
    tile = max(128, tile // 128 * 128)              # lane-aligned
    return tile


def focal_loss(inputs, targets, alpha, *, gamma=1.0, size_average=True,
               tile_n=None):
    """Pallas TPU focal loss.

    inputs:  [N, C] float logits. bf16 is the fast path: it streams in natively
             (halving HBM bytes); compute is always f32 in-kernel.
    targets: [N] integer class ids.
    alpha:   per-class weights with C elements (e.g. (C,) or (C, 1)).
    """
    n, c = inputs.shape
    # Transposed (N-on-lanes) layout: one-time XLA transpose in the wrapper.
    x_t = jnp.transpose(inputs)                      # (C, N), native dtype
    t2 = targets.reshape(1, n).astype(jnp.int32)     # (1, N)
    a2 = jnp.asarray(alpha, jnp.float32).reshape(c, 1)

    in_itemsize = jnp.dtype(inputs.dtype).itemsize
    if tile_n is None:
        tile_n = _pick_tile_n(n, c, in_itemsize)
    else:
        tile_n = int(min(tile_n, n))
        if tile_n < n:
            tile_n = max(128, _round_up(tile_n, 128))   # lane-aligned
            if tile_n >= n:
                tile_n = n
    num_tiles = int(pl.cdiv(n, tile_n))

    kernel = functools.partial(
        _focal_loss_kernel, gamma=float(gamma), n_total=n, tile_n=tile_n)

    # Advisory cost estimate using padded byte counts.
    n_pad = _round_up(n, 128) if n > 128 else n
    c_in = _round_up(c, _sublane_multiple(in_itemsize))
    cost = pl.CostEstimate(
        flops=8 * n * c,
        transcendentals=n * c + n,
        bytes_accessed=(c_in * in_itemsize * n_pad     # padded logits
                        + 8 * 4 * n_pad                # padded targets row
                        + _round_up(c, 8) * 128 * 4    # alpha
                        + num_tiles * 128 * 4),        # partial outputs
    )

    # VMEM limit: what the kernel actually needs + headroom (not 3/4 physical).
    needed = _padded_bytes_per_lane(c, in_itemsize) * tile_n + 8 * 1024 * 1024
    vmem_limit = int(min(max(needed, 16 * 1024 * 1024),
                         _vmem_capacity_bytes() // 2))

    # TODO(synk): if xprof still shows exposed input DMA for small blocks, add
    # pipeline_mode=pl.Buffered(3) on the logits BlockSpec only.
    partials = pl.pallas_call(
        kernel,
        out_shape=jax.ShapeDtypeStruct((1, num_tiles * 128), jnp.float32),
        grid=(num_tiles,),
        in_specs=[
            pl.BlockSpec((c, tile_n), lambda i: (0, i)),   # logits (C, N), native dtype
            pl.BlockSpec((1, tile_n), lambda i: (0, i)),   # targets (1, N)
            pl.BlockSpec((c, 1), lambda i: (0, 0)),        # alpha (C, 1), revisited
        ],
        out_specs=pl.BlockSpec((1, 128), lambda i: (0, i)),
        compiler_params=pltpu.CompilerParams(
            dimension_semantics=("parallel",),
            vmem_limit_bytes=vmem_limit,
        ),
        cost_estimate=cost,
    )(x_t, t2, a2)

    total = jnp.sum(partials)
    if size_average:
        total = total / jnp.float32(n)   # mean over the GLOBAL batch size
    return total


def focal_loss_ref(inputs, targets, alpha, *, gamma=1.0, size_average=True):
    """Pure-JAX reference mirroring the PyTorch module."""
    n, c = inputs.shape
    p = jax.nn.softmax(inputs.astype(jnp.float32), axis=1)
    mask = jax.nn.one_hot(targets, c, dtype=jnp.float32)
    probs = jnp.sum(p * mask, axis=1, keepdims=True) + 1e-5
    alpha_t = jnp.asarray(alpha, jnp.float32).reshape(-1)[targets].reshape(-1, 1)
    log_p = jnp.log(probs)
    batch_loss = -alpha_t * jnp.power(1.0 - probs, gamma) * log_p
    return jnp.mean(batch_loss) if size_average else jnp.sum(batch_loss)


if __name__ == "__main__":
    key = jax.random.PRNGKey(0)
    k_x, k_t = jax.random.split(key)

    N, C = 300, 5                                    # class_num=5 (module default)
    alpha = jnp.ones((C, 1), dtype=jnp.float32)      # alpha=None -> torch.ones(C, 1)
    inputs = jax.random.normal(k_x, (N, C), dtype=jnp.float32)
    targets = jax.random.randint(k_t, (N,), 0, C, dtype=jnp.int32)

    # 1) f32 logits, gamma=1, mean; forced 128-lane tiles -> 3-step grid with a
    #    ragged last tile (300 = 128 + 128 + 44), exercising the validity mask.
    loss = focal_loss(inputs, targets, alpha, gamma=1.0, size_average=True,
                      tile_n=128)
    loss = jax.block_until_ready(loss)
    ref = focal_loss_ref(inputs, targets, alpha, gamma=1.0, size_average=True)
    assert jnp.allclose(loss, ref, rtol=1e-3, atol=1e-4), (loss, ref)

    # 2) auto tile size (>= 2 tiles are kept even when VMEM would allow one).
    loss_auto = jax.block_until_ready(
        focal_loss(inputs, targets, alpha, gamma=1.0, size_average=True))
    assert jnp.allclose(loss_auto, ref, rtol=1e-3, atol=1e-4), (loss_auto, ref)

    # 3) bf16 logits stream in natively (no wrapper upcast), gamma=2, sum.
    x_bf16 = inputs.astype(jnp.bfloat16)
    loss_bf16 = jax.block_until_ready(
        focal_loss(x_bf16, targets, alpha, gamma=2.0, size_average=False,
                   tile_n=128))
    ref_bf16 = focal_loss_ref(x_bf16, targets, alpha, gamma=2.0,
                              size_average=False)
    assert jnp.allclose(loss_bf16, ref_bf16, rtol=1e-2, atol=1e-2), (loss_bf16, ref_bf16)

    # 4) small-N single full block path (N < 128 lanes).
    Ns = 50
    x_s = jax.random.normal(k_x, (Ns, C), dtype=jnp.float32)
    t_s = jax.random.randint(k_t, (Ns,), 0, C, dtype=jnp.int32)
    loss_s = jax.block_until_ready(
        focal_loss(x_s, t_s, alpha, gamma=1.0, size_average=True))
    ref_s = focal_loss_ref(x_s, t_s, alpha, gamma=1.0, size_average=True)
    assert jnp.allclose(loss_s, ref_s, rtol=1e-3, atol=1e-4), (loss_s, ref_s)

    print("KERNEL_OK")
</pallas_src>

<mosaic_0001>
module attributes {stable_mosaic.version = 11 : i64} {
  func.func @_focal_loss_kernel(%arg0: i32, %arg1: memref<5x128xf32, #tpu.memory_space<vmem>>, %arg2: memref<1x128xi32, #tpu.memory_space<vmem>>, %arg3: memref<5x1xf32, #tpu.memory_space<vmem>>, %arg4: memref<1x128xf32, #tpu.memory_space<vmem>>) attributes {dimension_semantics = [#tpu.dimension_semantics<parallel>], iteration_bounds = array<i64: 3>, scalar_prefetch = 0 : i64, scratch_operands = 0 : i64, tpu.core_type = #tpu.core_type<tc>, window_params = [{transform_indices = @transform_0, window_bounds = array<i64: 5, 128>}, {transform_indices = @transform_1, window_bounds = array<i64: 1, 128>}, {pipeline_mode = #tpu.pipeline_mode<synchronous>, transform_indices = @transform_2, window_bounds = array<i64: 5, 1>}, {transform_indices = @transform_3, window_bounds = array<i64: 1, 128>}]} {
    %c0 = arith.constant 0 : index
    %c0_0 = arith.constant 0 : index
    %0 = vector.load %arg1[%c0, %c0_0] : memref<5x128xf32, #tpu.memory_space<vmem>>, vector<5x128xf32>
    %c0_1 = arith.constant 0 : index
    %c0_2 = arith.constant 0 : index
    %1 = vector.load %arg2[%c0_1, %c0_2] : memref<1x128xi32, #tpu.memory_space<vmem>>, vector<1x128xi32>
    %c0_3 = arith.constant 0 : index
    %c0_4 = arith.constant 0 : index
    %2 = vector.load %arg3[%c0_3, %c0_4] : memref<5x1xf32, #tpu.memory_space<vmem>>, vector<5x1xf32>
    %cst = arith.constant dense<0xFF800000> : vector<128xf32>
    %3 = vector.multi_reduction <maximumf>, %0, %cst [0] : vector<5x128xf32> to vector<128xf32>
    %4 = vector.shape_cast %3 : vector<128xf32> to vector<1x128xf32>
    %5 = vector.broadcast %4 : vector<1x128xf32> to vector<5x128xf32>
    %6 = arith.subf %0, %5 : vector<5x128xf32>
    %7 = math.exp %6 : vector<5x128xf32>
    %cst_5 = arith.constant dense<0.000000e+00> : vector<128xf32>
    %8 = vector.multi_reduction <add>, %7, %cst_5 [0] : vector<5x128xf32> to vector<128xf32>
    %9 = vector.shape_cast %8 : vector<128xf32> to vector<1x128xf32>
    %10 = tpu.iota {dimensions = array<i32: 0>} : vector<5x128xi32>
    %11 = vector.broadcast %1 : vector<1x128xi32> to vector<5x128xi32>
    %12 = arith.cmpi eq, %10, %11 : vector<5x128xi32>
    %13 = arith.extui %12 : vector<5x128xi1> to vector<5x128xi32>
    %14 = arith.sitofp %13 : vector<5x128xi32> to vector<5x128xf32>
    %15 = arith.mulf %7, %14 : vector<5x128xf32>
    %cst_6 = arith.constant dense<0.000000e+00> : vector<128xf32>
    %16 = vector.multi_reduction <add>, %15, %cst_6 [0] : vector<5x128xf32> to vector<128xf32>
    %17 = vector.shape_cast %16 : vector<128xf32> to vector<1x128xf32>
    %18 = vector.broadcast %2 : vector<5x1xf32> to vector<5x128xf32>
    %19 = arith.mulf %18, %14 : vector<5x128xf32>
    %cst_7 = arith.constant dense<0.000000e+00> : vector<128xf32>
    %20 = vector.multi_reduction <add>, %19, %cst_7 [0] : vector<5x128xf32> to vector<128xf32>
    %21 = vector.shape_cast %20 : vector<128xf32> to vector<1x128xf32>
    %22 = arith.divf %17, %9 : vector<1x128xf32>
    %cst_8 = arith.constant 9.99999974E-6 : f32
    %23 = vector.broadcast %cst_8 : f32 to vector<1x128xf32>
    %24 = arith.addf %22, %23 : vector<1x128xf32>
    %25 = math.log %24 : vector<1x128xf32>
    %cst_9 = arith.constant 1.000000e+00 : f32
    %26 = vector.broadcast %cst_9 : f32 to vector<1x128xf32>
    %27 = arith.subf %26, %24 : vector<1x128xf32>
    %cst_10 = arith.constant 0.000000e+00 : f32
    %28 = vector.broadcast %cst_10 : f32 to vector<1x128xf32>
    %29 = arith.subf %28, %21 : vector<1x128xf32>
    %30 = arith.mulf %29, %27 : vector<1x128xf32>
    %31 = arith.mulf %30, %25 : vector<1x128xf32>
    %32 = tpu.iota {dimensions = array<i32: 1>} : vector<1x128xi32>
    %c128_i32 = arith.constant 128 : i32
    %33 = arith.muli %arg0, %c128_i32 : i32
    %34 = vector.broadcast %33 : i32 to vector<1x128xi32>
    %35 = arith.addi %34, %32 : vector<1x128xi32>
    %c300_i32 = arith.constant 300 : i32
    %36 = vector.broadcast %c300_i32 : i32 to vector<1x128xi32>
    %37 = arith.cmpi slt, %35, %36 : vector<1x128xi32>
    %cst_11 = arith.constant 0.000000e+00 : f32
    %38 = vector.broadcast %cst_11 : f32 to vector<1x128xf32>
    %39 = arith.select %37, %31, %38 : vector<1x128xi1>, vector<1x128xf32>
    %cst_12 = arith.constant dense<0.000000e+00> : vector<1xf32>
    %40 = vector.multi_reduction <add>, %39, %cst_12 [1] : vector<1x128xf32> to vector<1xf32>
    %41 = vector.shape_cast %40 : vector<1xf32> to vector<1x1xf32>
    %42 = tpu.iota {dimensions = array<i32: 1>} : vector<1x128xi32>
    %c0_i32 = arith.constant 0 : i32
    %43 = vector.broadcast %c0_i32 : i32 to vector<1x128xi32>
    %44 = arith.cmpi eq, %42, %43 : vector<1x128xi32>
    %cst_13 = arith.constant 0.000000e+00 : f32
    %45 = vector.shape_cast %41 : vector<1x1xf32> to vector<1x1xf32>
    %46 = vector.broadcast %45 : vector<1x1xf32> to vector<1x128xf32>
    %47 = vector.broadcast %cst_13 : f32 to vector<1x128xf32>
    %48 = arith.select %44, %46, %47 : vector<1x128xi1>, vector<1x128xf32>
    %c0_14 = arith.constant 0 : index
    %c0_15 = arith.constant 0 : index
    %49 = vector.load %arg4[%c0_14, %c0_15] : memref<1x128xf32, #tpu.memory_space<vmem>>, vector<1x128xf32>
    tpu.vector_store %arg4[%c0_14, %c0_15], %48 {strides = array<i32>} : memref<1x128xf32, #tpu.memory_space<vmem>>, vector<1x128xf32>,
    return
  }
  func.func @transform_0(%arg0: i32) -> (i32, i32) {
    %c0_i32 = arith.constant 0 : i32
    %c0_i32_0 = arith.constant 0 : i32
    return %c0_i32, %arg0 : i32, i32
  }
  func.func @transform_1(%arg0: i32) -> (i32, i32) {
    %c0_i32 = arith.constant 0 : i32
    %c0_i32_0 = arith.constant 0 : i32
    return %c0_i32, %arg0 : i32, i32
  }
  func.func @transform_2(%arg0: i32) -> (i32, i32) {
    %c0_i32 = arith.constant 0 : i32
    %c0_i32_0 = arith.constant 0 : i32
    %c0_i32_1 = arith.constant 0 : i32
    return %c0_i32, %c0_i32_0 : i32, i32
  }
  func.func @transform_3(%arg0: i32) -> (i32, i32) {
    %c0_i32 = arith.constant 0 : i32
    %c0_i32_0 = arith.constant 0 : i32
    return %c0_i32, %arg0 : i32, i32
  }
}

</mosaic_0001>

<llo_original>
// kernel: tpu_custom_call.1
$region0: #{tpu_custom_call.1}
  #allocation0 [shape = 'u32[]', space=smem, size = 0x4, offset = 0x4, fixed_abs, tag = 'smem constant byte address 0x4 - core index']
  #allocation1 [shape = 'u32[72,128]{1,0:T(1,128)}', space=vmem, size = 0x9000, scoped, tag = 'internal scratch']
  %s0 = inlined_call_operand.hbm [shape: f32[5,300], index: 0, kind: input, shape index: {}]
  %s1 = inlined_call_operand.vmem [shape: s32[1,300], index: 1, kind: input, shape index: {}]
  %s2 = inlined_call_operand.vmem [shape: f32[5,1], index: 2, kind: input, shape index: {}]
  %s3 = inlined_call_operand.hbm [shape: f32[1,384], index: 3, kind: output, shape index: {}]
  %s4 = sld [smem:[#allocation0]]
  $region49: #{tpu_custom_call.1} parent=0
    _
  %s6 = ssub.s32 1, %s4
  %s7 = scalar_select 0, %s6, %s4
  $region1: #{tpu_custom_call.1} parent=0
    #allocation2 [shape = 'u8[8192]{0}', space=vmem, size = 0x2000, scoped, tag = 'input window, operand 0']
    #allocation3 [shape = 's32[2]{0}', space=sflag, size = 0x8, scoped, tag = 'scoped memory for tpu_custom_call.1']
    #allocation4 [shape = 's32[2]{0}', space=sflag, size = 0x8, scoped, tag = 'scoped memory for tpu_custom_call.1']
    #allocation5 [shape = 'u8[1024]{0}', space=vmem, size = 0x400, scoped, tag = 'output window, operand 0']
    %8 = vsyncpa [#allocation3], 0
    %s9 = scalar_lea.sflag [#allocation3], 1
    %10 = vsyncpa %s9, 0
    %11 = vsyncpa [#allocation4], 0
    %s12 = scalar_lea.sflag [#allocation4], 1
    %13 = vsyncpa %s12, 0
    loop: start=0, step=1, limit=5
    $region2: #{tpu_custom_call.1} parent=1 // loop_pre_header
      _
    $region3: #{tpu_custom_call.1} parent=1 // loop_header
      %s15 = sphi 0, %s19
      %p16 = scmp.ge.s32.totalorder %s15, 5
      %s25 = sphi 0, %s27
      %s28 = sphi 0, %s25
      %s29 = sphi 0, %s28
      %s45 = sphi 0, %s29
      %s51 = sphi 0, %s53
      %s54 = sphi 0, %s51
      %s55 = sphi 0, %s54
      %s71 = sphi 0, %s55
      %s75 = sphi 0, %s75
      %s77 = sphi 0, %s75
      %s78 = sphi 0, %s77
      %s92 = sphi 0, %s78
      %s98 = sphi 0, %s100
      %s101 = sphi 0, %s98
      %s102 = sphi 0, %s101
      %s118 = sphi 0, %s102
    $region4: #{tpu_custom_call.1} parent=1 // loop_header_branch
      %18 = sbr.rel (%p16) target = $region8
    $region5: #{tpu_custom_call.1} parent=1 // loop_body
      %s20 = ssub.s32 %s15, 1
      %s21 = ssub.s32 %s15, 2
      %s22 = sadd.s32 %s15, 1
      %s23 = ssub.s32 %s15, %s22
      %p24 = scmp.eq.s32.totalorder %s23, 0
      %s26 = sadd.s32 %s25, 1
      %s27 = scalar_select %p24, %s25, %s26
      %p30 = pneg %p24
      %p31 = scmp.eq.s32.totalorder %s15, 2
      %p32 = por %p30, %p31
      %p33 = scmp.ne.s32.totalorder %s25, %s28
      %p34 = scmp.eq.s32.totalorder %s15, 0
      %p35 = por %p33, %p34
      %p36 = scmp.ne.s32.totalorder %s25, %s28
      %p37 = scmp.eq.s32.totalorder %s20, 2
      %p38 = por %p36, %p37
      %p39 = scmp.ne.s32.totalorder %s28, %s29
      %p40 = scmp.eq.s32.totalorder %s20, 0
      %p41 = por %p39, %p40
      %p42 = scmp.ne.s32.totalorder %s28, %s29
      %p43 = scmp.eq.s32.totalorder %s21, 2
      %p44 = por %p42, %p43
      %p46 = scmp.ne.s32.totalorder %s29, %s45
      %p47 = scmp.eq.s32.totalorder %s21, 0
      %p48 = por %p46, %p47
      %s49 = ssub.s32 %s15, %s22
      %p50 = scmp.eq.s32.totalorder %s49, 0
      %s52 = sadd.s32 %s51, 1
      %s53 = scalar_select %p50, %s51, %s52
      %p56 = pneg %p50
      %p57 = scmp.eq.s32.totalorder %s15, 2
      %p58 = por %p56, %p57
      %p59 = scmp.ne.s32.totalorder %s51, %s54
      %p60 = scmp.eq.s32.totalorder %s15, 0
      %p61 = por %p59, %p60
      %p62 = scmp.ne.s32.totalorder %s51, %s54
      %p63 = scmp.eq.s32.totalorder %s20, 2
      %p64 = por %p62, %p63
      %p65 = scmp.ne.s32.totalorder %s54, %s55
      %p66 = scmp.eq.s32.totalorder %s20, 0
      %p67 = por %p65, %p66
      %p68 = scmp.ne.s32.totalorder %s54, %s55
      %p69 = scmp.eq.s32.totalorder %s21, 2
      %p70 = por %p68, %p69
      %p72 = scmp.ne.s32.totalorder %s55, %s71
      %p73 = scmp.eq.s32.totalorder %s21, 0
      %p74 = por %p72, %p73
      %s76 = sadd.s32 %s75, 1
      %p79 = scmp.eq.s32.totalorder %s15, 2
      %p80 = scmp.ne.s32.totalorder %s75, %s77
      %p81 = scmp.eq.s32.totalorder %s15, 0
      %p82 = por %p80, %p81
      %p83 = scmp.ne.s32.totalorder %s75, %s77
      %p84 = scmp.eq.s32.totalorder %s20, 2
      %p85 = por %p83, %p84
      %p86 = scmp.ne.s32.totalorder %s77, %s78
      %p87 = scmp.eq.s32.totalorder %s20, 0
      %p88 = por %p86, %p87
      %p89 = scmp.ne.s32.totalorder %s77, %s78
      %p90 = scmp.eq.s32.totalorder %s21, 2
      %p91 = por %p89, %p90
      %p93 = scmp.ne.s32.totalorder %s78, %s92
      %p94 = scmp.eq.s32.totalorder %s21, 0
      %p95 = por %p93, %p94
      %s96 = ssub.s32 %s15, %s22
      %p97 = scmp.eq.s32.totalorder %s96, 0
      %s99 = sadd.s32 %s98, 1
      %s100 = scalar_select %p97, %s98, %s99
      %p103 = pneg %p97
      %p104 = scmp.eq.s32.totalorder %s15, 2
      %p105 = por %p103, %p104
      %p106 = scmp.ne.s32.totalorder %s98, %s101
      %p107 = scmp.eq.s32.totalorder %s15, 0
      %p108 = por %p106, %p107
      %p109 = scmp.ne.s32.totalorder %s98, %s101
      %p110 = scmp.eq.s32.totalorder %s20, 2
      %p111 = por %p109, %p110
      %p112 = scmp.ne.s32.totalorder %s101, %s102
      %p113 = scmp.eq.s32.totalorder %s20, 0
      %p114 = por %p112, %p113
      %p115 = scmp.ne.s32.totalorder %s101, %s102
      %p116 = scmp.eq.s32.totalorder %s21, 2
      %p117 = por %p115, %p116
      %p119 = scmp.ne.s32.totalorder %s102, %s118
      %p120 = scmp.eq.s32.totalorder %s21, 0
      %p121 = por %p119, %p120
      %p122 = scmp.le.s32.totalorder 1, %s15
      %p123 = scmp.lt.s32.totalorder %s15, 4
      %p124 = pnand %p122, %p123
      %p125 = pneg %p124
      // Predicated region
      $region9: #{tpu_custom_call.1} parent=5 // pred_check
        _
      $region10: #{tpu_custom_call.1} parent=5 // pred_check_branch
        %127 = sbr.rel (%p124) target = $region12
      $region11: #{tpu_custom_call.1} parent=5 // pred_region
        %s128 = ssub.s32 %s15, 1
        // Predicated region
        $region13: #{tpu_custom_call.1} parent=11 // pred_check
          %p129 = pneg %p88
        $region14: #{tpu_custom_call.1} parent=11 // pred_check_branch
          %131 = sbr.rel (%p129) target = $region16
        $region15: #{tpu_custom_call.1} parent=11 // pred_region
          _
        $region16: #{tpu_custom_call.1} parent=11 // pred_fallthru
          _
      $region12: #{tpu_custom_call.1} parent=5 // pred_fallthru
        _
      %p132 = scmp.lt.s32.totalorder %s15, 3
      // Predicated region
      $region17: #{tpu_custom_call.1} parent=5 // pred_check
        %p133 = pneg %p132
      $region18: #{tpu_custom_call.1} parent=5 // pred_check_branch
        %135 = sbr.rel (%p133) target = $region20
      $region19: #{tpu_custom_call.1} parent=5 // pred_region
        // Predicated region
        $region21: #{tpu_custom_call.1} parent=19 // pred_check
          %p136 = pneg %p35
        $region22: #{tpu_custom_call.1} parent=19 // pred_check_branch
          %138 = sbr.rel (%p136) target = $region24
        $region23: #{tpu_custom_call.1} parent=19 // pred_region
          %s139 = sand.u32 %s25, 1
          %s140 = scalar_lea.sflag [#allocation3], %s139
          %s141 = sand.u32 %s25, 1
          %s142 = smul.addr %s141, 8
          %s143 = scalar_lea.vmem [#allocation2], %s142
          %145 = vsyncadd %s140, 0
          %s146 = smul.addr %s15, 8
          %s147 = scalar_lea.hbm %s0, %s146
          %s149 = sshll.u32 %s147, 4
          %s150 = int_to_ptr.hbm [resolvable:$true] %s149
          %s151 = sshll.u32 %s143, 4
          %s152 = int_to_ptr.vmem [resolvable:$true] %s151
          %154 = dma.hbm_to_vmem [thread:$0]  %s150, 128, %s152, %s140
        $region24: #{tpu_custom_call.1} parent=19 // pred_fallthru
          _
        // Predicated region
        $region25: #{tpu_custom_call.1} parent=19 // pred_check
          %p155 = pneg %p61
        $region26: #{tpu_custom_call.1} parent=19 // pred_check_branch
          %157 = sbr.rel (%p155) target = $region28
        $region27: #{tpu_custom_call.1} parent=19 // pred_region
          %p158 = scmp.lt.s32.totalorder %s15, 2
          %s159 = scalar_select %p158, %s15, 2
          %s160 = scalar_lea.vmem %s1, %s159
        $region28: #{tpu_custom_call.1} parent=19 // pred_fallthru
          _
      $region20: #{tpu_custom_call.1} parent=5 // pred_fallthru
        _
      %p161 = scmp.le.s32.totalorder 1, %s15
      %p162 = scmp.lt.s32.totalorder %s15, 4
      %p163 = pnand %p161, %p162
      %p164 = pneg %p163
      // Predicated region
      $region29: #{tpu_custom_call.1} parent=5 // pred_check
        _
      $region30: #{tpu_custom_call.1} parent=5 // pred_check_branch
        %166 = sbr.rel (%p163) target = $region32
      $region31: #{tpu_custom_call.1} parent=5 // pred_region
        %s167 = ssub.s32 %s15, 1
        %s168 = sand.u32 %s28, 1
        %s169 = scalar_lea.sflag [#allocation3], %s168
        %s170 = sand.u32 %s28, 1
        %s171 = smul.addr %s170, 8
        %s172 = scalar_lea.vmem [#allocation2], %s171
        // Predicated region
        $region33: #{tpu_custom_call.1} parent=31 // pred_check
          %p173 = pneg %p41
        $region34: #{tpu_custom_call.1} parent=31 // pred_check_branch
          %175 = sbr.rel (%p173) target = $region36
        $region35: #{tpu_custom_call.1} parent=31 // pred_region
          %177 = dma.done %s169, 128
        $region36: #{tpu_custom_call.1} parent=31 // pred_fallthru
          _
        %s178 = sand.u32 %s28, 1
        %s179 = scalar_lea.sflag [#allocation3], %s178
        %s180 = sand.u32 %s28, 1
        %s181 = smul.addr %s180, 8
        %s182 = scalar_lea.vmem [#allocation2], %s181
        %p183 = pneg %p41
        %p184 = pneg %p38
        %p185 = scmp.lt.s32.totalorder %s20, 2
        %s186 = scalar_select %p185, %s20, 2
        %s187 = scalar_lea.vmem %s1, %s186
        %p188 = pneg %p67
        %p189 = pneg %p64
        %p190 = pneg %p88
        %p191 = pneg %p85
        %p192 = pneg %p114
        %p193 = pneg %p111
        %s194 = sand.u32 %s101, 1
        %s195 = scalar_lea.sflag [#allocation4], %s194
        %s196 = sand.u32 %s101, 1
        %s197 = scalar_lea.vmem [#allocation5], %s196
        %p198 = scmp.lt.s32.totalorder %s20, 2
        %s199 = scalar_select %p198, %s20, 2
        %s200 = scalar_lea.vmem %s1, %s199
        %v201 = vld [vmem:[%s172] sm:$0x1f]
        %v202 = vld [vmem:[%s200] sm:$0x1]
        %v203 = vld [vmem:[%s2] sm:$0x1f]
        %vm204 = vcmask 1044480
        %v205 = vsel %vm204, %v201, -inf
        %v206 = vrot.slane %v205, 4
        %v207 = vmax.f32 %v205, %v206
        %v208 = vrot.slane %v207, 2
        %v209 = vmax.f32 %v207, %v208
        %v210 = vrot.slane %v209, 1
        %v211 = vmax.f32 %v209, %v210
        %v212 = vsub.f32 %v201, %v211
        %v213 = vmul.f32 %v212, 1.442695
        %v214 = vpow.pop %v213
        %v215 = vsel %vm204, %v214, 0.0
        %v216 = vrot.slane %v215, 4
        %v217 = vadd.f32 %v215, %v216
        %v218 = vrot.slane %v217, 2
        %v219 = vadd.f32 %v217, %v218
        %v220 = vrot.slane %v219, 1
        %v221 = vadd.f32 %v219, %v220
        %v222 = vlaneseq
        %v223 = vshrl.u32 %v222, 7
        %v224 = vperm.slane %v202, 0
        %vm225 = vcmp.eq.s32.totalorder %v223, %v224
        %v226 = vsel %vm225, 1, 0
        %v227 = vcvt.s32.f32 %v226
        %v228 = vmul.f32 %v214, %v227
        %v229 = vsel %vm204, %v228, 0.0
        %v230 = vrot.slane %v229, 4
        %v231 = vadd.f32 %v229, %v230
        %v232 = vrot.slane %v231, 2
        %v233 = vadd.f32 %v231, %v232
        %v234 = vrot.slane %v233, 1
        %v235 = vadd.f32 %v233, %v234
        %237 = vset.pattern.permute.xlu0 0
        %238 = vperm.xlu0 %237, %v203
        %v239 = vpop.permute.xlu0 %238
        %v241 = vmul.f32 %v239, %v227
        %v242 = vsel %vm204, %v241, 0.0
        %v243 = vrot.slane %v242, 4
        %v244 = vadd.f32 %v242, %v243
        %v245 = vrot.slane %v244, 2
        %v246 = vadd.f32 %v244, %v245
        %v247 = vrot.slane %v246, 1
        %v248 = vadd.f32 %v246, %v247
        %v249 = vrcp.pop %v221
        %v250 = vmul.f32 %v221, %v249
        %v251 = vsub.f32 1.0, %v250
        %v252 = vmul.f32 %v249, %v251
        %v253 = vadd.f32 %v249, %v252
        %vm254 = vweird.f32 %v221
        %vm255 = vweird.f32 %v249
        %vm256 = vmor %vm254, %vm255
        %v257 = vsel %vm256, %v249, %v253
        %v258 = vand.u32 2147483647, %v221
        %vm259 = vcmp.eq.f32.partialorder %v258, 8.507059e+37
        %v260 = vand.u32 %v221, 2147483648
        %v261 = vor.u32 1.1754944e-38, %v260
        %v262 = vsel %vm259, %v261, %v257
        %v263 = vmul.f32 %v235, %v262
        %v264 = vadd.f32 %v263, 1e-05
        %v265 = vlog2.pop %v264
        %v266 = vmul.f32 %v265, 0.6931472
        %v267 = vsub.f32 1.0, %v264
        %v268 = vsub.f32 0.0, %v248
        %v269 = vmul.f32 %v268, %v267
        %v270 = vmul.f32 %v269, %v266
        %v271 = vlaneseq
        %v272 = vand.u32 %v271, 127
        %s273 = smul.u32 %s20, 128
        %v274 = vstv %s273
        %v275 = vadd.s32 %v274, %v272
        %vm276 = vcmp.lt.s32.totalorder %v275, 300
        %v277 = vsel %vm276, %v270, 0.0
        %278 = vadd.xlane.f32.xlu0 %v277
        %v279 = vpop.xlane.xlu0 %278
        %vm280 = vcmp.eq.s32.totalorder %v272, 0
        %v281 = vsel %vm280, %v279, 0.0
        %282 = vst [vmem:[%s197] sm:$0x1] %v281
        %s283 = sand.u32 %s101, 1
        %s284 = scalar_lea.sflag [#allocation4], %s283
        %s285 = sand.u32 %s101, 1
        %s286 = scalar_lea.vmem [#allocation5], %s285
        // Predicated region
        $region37: #{tpu_custom_call.1} parent=31 // pred_check
          %p287 = pneg %p111
        $region38: #{tpu_custom_call.1} parent=31 // pred_check_branch
          %289 = sbr.rel (%p287) target = $region40
        $region39: #{tpu_custom_call.1} parent=31 // pred_region
          %291 = vsyncadd %s284, 0
          %s292 = scalar_lea.hbm %s3, %s20
          %s294 = sshll.u32 %s286, 4
          %s295 = int_to_ptr.vmem [resolvable:$true] %s294
          %s296 = sshll.u32 %s292, 4
          %s297 = int_to_ptr.hbm [resolvable:$true] %s296
          %299 = dma.vmem_to_hbm [thread:$0]  %s295, 16, %s297, %s284
        $region40: #{tpu_custom_call.1} parent=31 // pred_fallthru
          _
      $region32: #{tpu_custom_call.1} parent=5 // pred_fallthru
        _
      %p300 = scmp.le.s32.totalorder 2, %s15
      // Predicated region
      $region41: #{tpu_custom_call.1} parent=5 // pred_check
        %p301 = pneg %p300
      $region42: #{tpu_custom_call.1} parent=5 // pred_check_branch
        %303 = sbr.rel (%p301) target = $region44
      $region43: #{tpu_custom_call.1} parent=5 // pred_region
        %s304 = ssub.s32 %s15, 2
        // Predicated region
        $region45: #{tpu_custom_call.1} parent=43 // pred_check
          %p305 = pneg %p117
        $region46: #{tpu_custom_call.1} parent=43 // pred_check_branch
          %307 = sbr.rel (%p305) target = $region48
        $region47: #{tpu_custom_call.1} parent=43 // pred_region
          %s308 = sand.u32 %s102, 1
          %s309 = scalar_lea.sflag [#allocation4], %s308
          %s310 = sand.u32 %s102, 1
          %s311 = scalar_lea.vmem [#allocation5], %s310
          %313 = dma.done %s309, 16
        $region48: #{tpu_custom_call.1} parent=43 // pred_fallthru
          _
      $region44: #{tpu_custom_call.1} parent=5 // pred_fallthru
        _
    $region6: #{tpu_custom_call.1} parent=1 // loop_footer
      %s19 = sadd.s32 1, %s15
    $region7: #{tpu_custom_call.1} parent=1 // loop_footer_branch
      %14 = sbr.rel target = $region3
    $region8: #{tpu_custom_call.1} parent=1 // loop_exit
      _
    %314 = vsyncpa [#allocation3], 1
    %s315 = scalar_lea.sflag [#allocation3], 1
    %316 = vsyncpa %s315, 1
    %317 = vsyncpa [#allocation4], 1
    %s318 = scalar_lea.sflag [#allocation4], 1
    %319 = vsyncpa %s318, 1

</llo_original>
